<compile_context>
chip_gen: v5e
topology: v5e:2x2
jax: 0.10.0
libtpu: 0.0.40
codegen_flags: <defaults>
</compile_context>

<pallas_src>
import functools
import math

import jax
import jax.numpy as jnp
import numpy as np
from jax.experimental import pallas as pl
from jax.experimental.pallas import tpu as pltpu


# ----------------------------------------------------------------------------
# init-time weight packing (layout only, done once)
# ----------------------------------------------------------------------------
def _banded_conv_weight(w, w_in, w_out, stride, padding, dtype):
    """Pack a PyTorch conv weight (Cout, Cin, KH, KW) into KH banded GEMM
    matrices of shape (W_in*Cin, W_out*Cout).

    Row tap i maps one input row (lanes = w*Cin + ci) to one output row
    (lanes = ow*Cout + co); kernel width, stride and width-padding are
    absorbed into the band sparsity, so the kernel never materializes im2col
    patches or zero-padded columns.
    """
    cout, cin, kh, kw = w.shape
    wnp = np.asarray(w, np.float32)
    band = np.zeros((kh, w_in * cin, w_out * cout), np.float32)
    for i in range(kh):
        for ow in range(w_out):
            for j in range(kw):
                wcol = stride * ow - padding + j
                if 0 <= wcol < w_in:
                    band[i, wcol * cin:(wcol + 1) * cin,
                         ow * cout:(ow + 1) * cout] = wnp[:, :, i, j].T
    return jnp.asarray(band, dtype)


def init_params(input_shape, conv_kwargs, hiddens, seed=42):
    """PyTorch-style (Cout,Cin,KH,KW)/(out,in) parameters with fan-in init."""
    c, h, w = input_shape
    key = jax.random.PRNGKey(seed)
    convs = []
    in_c, cur_h, cur_w = c, h, w
    for kwargs in conv_kwargs:
        out_c = kwargs["out_channels"]
        k = kwargs["kernel_size"]
        stride = kwargs.get("stride", 1)
        padding = kwargs.get("padding", 0)
        key, k1, k2 = jax.random.split(key, 3)
        fan_in = in_c * k * k
        bound = 1.0 / math.sqrt(fan_in)
        wgt = jax.random.uniform(k1, (out_c, in_c, k, k), jnp.float32, -bound, bound)
        bias = jax.random.uniform(k2, (out_c,), jnp.float32, -bound, bound)
        convs.append((wgt, bias, stride, padding))
        cur_h = (cur_h + 2 * padding - k) // stride + 1
        cur_w = (cur_w + 2 * padding - k) // stride + 1
        in_c = out_c
    flat_dim = in_c * cur_h * cur_w
    fc = []
    dims = (flat_dim,) + tuple(hiddens)
    for li in range(len(hiddens)):
        key, k1, k2 = jax.random.split(key, 3)
        bound = 1.0 / math.sqrt(dims[li])
        w_fc = jax.random.uniform(k1, (dims[li + 1], dims[li]), jnp.float32, -bound, bound)
        b_fc = jax.random.uniform(k2, (dims[li + 1],), jnp.float32, -bound, bound)
        fc.append((w_fc, b_fc))
    return {"convs": convs, "fc": fc, "input_shape": input_shape}


def pack_params(params, use_bf16=False):
    """Repack PyTorch-layout params into kernel-ready tensors (init time)."""
    wdtype = jnp.bfloat16 if use_bf16 else jnp.float32
    c_in, h_in, w_in = params["input_shape"]
    conv_meta = []
    weights = []
    for (wgt, bias, stride, padding) in params["convs"]:
        c_out, _, kh, kw = wgt.shape
        h_out = (h_in + 2 * padding - kh) // stride + 1
        w_out = (w_in + 2 * padding - kw) // stride + 1
        weights.append(_banded_conv_weight(wgt, w_in, w_out, stride, padding, wdtype))
        weights.append(jnp.asarray(
            np.tile(np.asarray(bias, np.float32), w_out).reshape(1, w_out * c_out)))
        conv_meta.append((kh, stride, padding, h_in, w_in, c_in, h_out, w_out, c_out))
        c_in, h_in, w_in = c_out, h_out, w_out

    # TODO(synk): hiddens=None (CNN without the MLP head) is not wired into the
    # fused kernel; the test config uses hiddens=(32,).
    assert len(params["fc"]) >= 1
    for li, (wfc, bfc) in enumerate(params["fc"]):
        out_dim, in_dim = wfc.shape
        if li == 0:
            # Fold torch.flatten's (C, H, W) ordering and the (out, in) Linear
            # layout into the weight: rows become (h, w, c) to match the
            # kernel's conv-output layout.  Pure init-time permutation.
            assert in_dim == c_in * h_in * w_in
            wp = (np.asarray(wfc, np.float32)
                  .reshape(out_dim, c_in, h_in, w_in)
                  .transpose(2, 3, 1, 0)
                  .reshape(in_dim, out_dim))
        else:
            wp = np.asarray(wfc, np.float32).T
        weights.append(jnp.asarray(wp, wdtype))
        weights.append(jnp.asarray(np.asarray(bfc, np.float32).reshape(1, out_dim)))

    return {
        "conv_meta": tuple(conv_meta),
        "weights": weights,
        "n_fc": len(params["fc"]),
        "out_dim": params["fc"][-1][0].shape[0],
        "input_shape": params["input_shape"],
    }


# ----------------------------------------------------------------------------
# Fused Pallas kernel: conv stack + flatten + MLP for one image per grid step
# ----------------------------------------------------------------------------
def _make_kernel(conv_meta, n_fc):
    n_conv = len(conv_meta)
    n_inputs = 1 + 2 * n_conv + 2 * n_fc

    def kernel(*refs):
        x_ref = refs[0]
        o_ref = refs[n_inputs]
        scratch = refs[n_inputs + 1:]
        pad_refs = scratch[:n_conv - 1]      # padded input scratch, conv layers >= 1
        ylast_ref = scratch[n_conv - 1]      # stride-1 row sweep of the last conv

        def conv_layer(li, in_ref, leading_batch_dim):
            kh, stride, padding, h_in, w_in, c_in, h_out, w_out, c_out = conv_meta[li]
            w_band_ref = refs[1 + 2 * li]
            bias_ref = refs[2 + 2 * li]
            n_sweep = h_in + 2 * padding - kh + 1
            acc = None
            for i in range(kh):          # unrolled: kh banded MXU GEMMs
                if leading_batch_dim:
                    lhs = in_ref[0, i:i + n_sweep, :]
                else:
                    lhs = in_ref[i:i + n_sweep, :]
                term = jnp.dot(lhs.astype(w_band_ref.dtype), w_band_ref[i],
                               preferred_element_type=jnp.float32)
                acc = term if acc is None else acc + term
            return jnp.maximum(acc + bias_ref[...], 0.0)   # f32 epilogue

        # -------- conv stack (activations never leave VMEM) --------
        y = conv_layer(0, x_ref, True)
        for li in range(1, n_conv):
            _, stride_p, _, _, _, _, h_out_p, _, _ = conv_meta[li - 1]
            pad_cur = conv_meta[li][2]
            p_ref = pad_refs[li - 1]
            p_ref[...] = jnp.zeros_like(p_ref)             # zero halo rows
            if stride_p == 1:
                p_ref[pad_cur:pad_cur + h_out_p, :] = y
            else:
                for oh in range(h_out_p):
                    p_ref[pad_cur + oh:pad_cur + oh + 1, :] = (
                        y[stride_p * oh:stride_p * oh + 1, :])
            y = conv_layer(li, p_ref, False)

        ylast_ref[...] = y

        # -------- MLP head --------
        _, stride_l, _, _, _, _, h_out_l, w_out_l, c_out_l = conv_meta[-1]
        row_width = w_out_l * c_out_l

        # First Linear: contract the (C,H,W)-flattened activation directly from
        # the conv-output rows; the flatten permutation lives in the packed
        # weight, one row_width-wide K block per output row.
        w0_ref = refs[1 + 2 * n_conv]
        b0_ref = refs[2 + 2 * n_conv]
        z = None
        for oh in range(h_out_l):
            lhs = ylast_ref[stride_l * oh:stride_l * oh + 1, :]
            rhs = w0_ref[oh * row_width:(oh + 1) * row_width, :]
            term = jnp.dot(lhs.astype(w0_ref.dtype), rhs,
                           preferred_element_type=jnp.float32)
            z = term if z is None else z + term
        z = z + b0_ref[...]
        if n_fc > 1:
            z = jnp.maximum(z, 0.0)

        for fi in range(1, n_fc):
            w_ref = refs[1 + 2 * n_conv + 2 * fi]
            b_ref = refs[2 + 2 * n_conv + 2 * fi]
            z = jnp.dot(z.astype(w_ref.dtype), w_ref[...],
                        preferred_element_type=jnp.float32) + b_ref[...]
            if fi < n_fc - 1:
                z = jnp.maximum(z, 0.0)

        o_ref[0] = z.astype(o_ref.dtype)

    return kernel


def _const_index_map(ndim):
    def index_map(b):
        return (0,) * ndim
    return index_map


def cnn_forward(x_nchw, packed):
    """x_nchw: (N, C, H, W) float32 -> (N, hidden) float32."""
    conv_meta = packed["conv_meta"]
    weights = packed["weights"]
    n_fc = packed["n_fc"]
    out_dim = packed["out_dim"]
    n_conv = len(conv_meta)

    n = x_nchw.shape[0]
    c0, h0, w0 = packed["input_shape"]
    pad0 = conv_meta[0][2]

    # NCHW -> rows = (row-padded) image row, lanes = w*C + c.  Tiny layout glue
    # on the raw input only (a few KB); everything downstream is in-kernel.
    x0 = jnp.transpose(x_nchw, (0, 2, 3, 1)).reshape(n, h0, w0 * c0)
    x0 = jnp.pad(x0, ((0, 0), (pad0, pad0), (0, 0)))

    in_specs = [pl.BlockSpec((1,) + x0.shape[1:], lambda b: (b, 0, 0))]
    for wt in weights:
        in_specs.append(pl.BlockSpec(wt.shape, _const_index_map(wt.ndim)))

    scratch_shapes = []
    for li in range(1, n_conv):
        _, _, padding, h_in, w_in, c_in, _, _, _ = conv_meta[li]
        scratch_shapes.append(
            pltpu.VMEM((h_in + 2 * padding, w_in * c_in), jnp.float32))
    kh, _, padding, h_in, _, _, _, w_out, c_out = conv_meta[-1]
    scratch_shapes.append(
        pltpu.VMEM((h_in + 2 * padding - kh + 1, w_out * c_out), jnp.float32))

    out = pl.pallas_call(
        _make_kernel(conv_meta, n_fc),
        out_shape=jax.ShapeDtypeStruct((n, 1, out_dim), jnp.float32),
        grid=(n,),
        in_specs=in_specs,
        out_specs=pl.BlockSpec((1, 1, out_dim), lambda b: (b, 0, 0)),
        scratch_shapes=scratch_shapes,
        compiler_params=pltpu.CompilerParams(
            dimension_semantics=("parallel",)),
    )(x0, *weights)
    return out[:, 0, :]


# ----------------------------------------------------------------------------
# Plain-JAX reference of the PyTorch module (for correctness checking)
# ----------------------------------------------------------------------------
def reference_forward(x, params):
    y = x
    for (w, b, stride, padding) in params["convs"]:
        y = jax.lax.conv_general_dilated(
            y, w,
            window_strides=(stride, stride),
            padding=((padding, padding), (padding, padding)),
            dimension_numbers=("NCHW", "OIHW", "NCHW"))
        y = jnp.maximum(y + b[None, :, None, None], 0.0)
    y = y.reshape(y.shape[0], -1)
    n_fc = len(params["fc"])
    for li, (w, b) in enumerate(params["fc"]):
        y = y @ w.T + b
        if li < n_fc - 1:
            y = jnp.maximum(y, 0.0)
    return y


if __name__ == "__main__":
    # Small config consistent with the module: input_shape=(4,16,16), two
    # convs, hiddens=(32,), batch=2.
    input_shape = (4, 16, 16)
    conv_kwargs = (
        {"out_channels": 8, "kernel_size": 3, "stride": 1, "padding": 1},
        {"out_channels": 8, "kernel_size": 3, "stride": 2, "padding": 1},
    )
    hiddens = (32,)

    params = init_params(input_shape, conv_kwargs, hiddens)
    packed = pack_params(params, use_bf16=False)  # set True for bf16 MXU operands

    x = jax.random.normal(jax.random.PRNGKey(0), (2, *input_shape), jnp.float32)

    fwd = jax.jit(functools.partial(cnn_forward, packed=packed))
    out = jax.block_until_ready(fwd(x))

    assert out.shape == (2, hiddens[-1]), out.shape
    assert bool(jnp.all(jnp.isfinite(out)))

    ref = reference_forward(x, params)
    max_err = float(jnp.max(jnp.abs(out - ref)))
    assert max_err < 5e-2, f"kernel mismatch vs reference: max abs err {max_err}"

    print("KERNEL_OK")
</pallas_src>

<mosaic_0001>
module attributes {stable_mosaic.version = 11 : i64} {
  func.func @kernel(%arg0: i32, %arg1: memref<1x18x64xf32, #tpu.memory_space<vmem>>, %arg2: memref<3x64x128xf32, #tpu.memory_space<vmem>>, %arg3: memref<1x128xf32, #tpu.memory_space<vmem>>, %arg4: memref<3x128x64xf32, #tpu.memory_space<vmem>>, %arg5: memref<1x64xf32, #tpu.memory_space<vmem>>, %arg6: memref<512x32xf32, #tpu.memory_space<vmem>>, %arg7: memref<1x32xf32, #tpu.memory_space<vmem>>, %arg8: memref<1x1x32xf32, #tpu.memory_space<vmem>>, %arg9: memref<18x128xf32, #tpu.memory_space<vmem>>, %arg10: memref<16x64xf32, #tpu.memory_space<vmem>>) attributes {dimension_semantics = [#tpu.dimension_semantics<parallel>], iteration_bounds = array<i64: 2>, scalar_prefetch = 0 : i64, scratch_operands = 2 : i64, tpu.core_type = #tpu.core_type<tc>, window_params = [{transform_indices = @transform_0, window_bounds = array<i64: 1, 18, 64>}, {pipeline_mode = #tpu.pipeline_mode<synchronous>, transform_indices = @transform_1, window_bounds = array<i64: 3, 64, 128>}, {pipeline_mode = #tpu.pipeline_mode<synchronous>, transform_indices = @transform_2, window_bounds = array<i64: 1, 128>}, {pipeline_mode = #tpu.pipeline_mode<synchronous>, transform_indices = @transform_3, window_bounds = array<i64: 3, 128, 64>}, {pipeline_mode = #tpu.pipeline_mode<synchronous>, transform_indices = @transform_4, window_bounds = array<i64: 1, 64>}, {pipeline_mode = #tpu.pipeline_mode<synchronous>, transform_indices = @transform_5, window_bounds = array<i64: 512, 32>}, {pipeline_mode = #tpu.pipeline_mode<synchronous>, transform_indices = @transform_6, window_bounds = array<i64: 1, 32>}, {transform_indices = @transform_7, window_bounds = array<i64: 1, 1, 32>}]} {
    %c0 = arith.constant 0 : index
    %c0_0 = arith.constant 0 : index
    %c0_1 = arith.constant 0 : index
    %0 = vector.load %arg1[%c0, %c0_0, %c0_1] : memref<1x18x64xf32, #tpu.memory_space<vmem>>, vector<1x16x64xf32>
    %1 = vector.shape_cast %0 : vector<1x16x64xf32> to vector<16x64xf32>
    %c0_2 = arith.constant 0 : index
    %c0_3 = arith.constant 0 : index
    %c0_4 = arith.constant 0 : index
    %2 = vector.load %arg2[%c0_2, %c0_3, %c0_4] : memref<3x64x128xf32, #tpu.memory_space<vmem>>, vector<1x64x128xf32>
    %3 = vector.shape_cast %2 : vector<1x64x128xf32> to vector<64x128xf32>
    %cst = arith.constant dense<0.000000e+00> : vector<16x128xf32>
    %4 = tpu.matmul %1, %3, %cst {dimension_numbers = #tpu.dot_dimension_numbers<[1], [0], [0], [1], [0, 0, 1, 1], [], []>} : vector<16x64xf32>, vector<64x128xf32>, vector<16x128xf32> -> vector<16x128xf32>
    %c0_5 = arith.constant 0 : index
    %c1 = arith.constant 1 : index
    %c0_6 = arith.constant 0 : index
    %5 = vector.load %arg1[%c0_5, %c1, %c0_6] : memref<1x18x64xf32, #tpu.memory_space<vmem>>, vector<1x16x64xf32>
    %6 = vector.shape_cast %5 : vector<1x16x64xf32> to vector<16x64xf32>
    %c1_7 = arith.constant 1 : index
    %c0_8 = arith.constant 0 : index
    %c0_9 = arith.constant 0 : index
    %7 = vector.load %arg2[%c1_7, %c0_8, %c0_9] : memref<3x64x128xf32, #tpu.memory_space<vmem>>, vector<1x64x128xf32>
    %8 = vector.shape_cast %7 : vector<1x64x128xf32> to vector<64x128xf32>
    %cst_10 = arith.constant dense<0.000000e+00> : vector<16x128xf32>
    %9 = tpu.matmul %6, %8, %cst_10 {dimension_numbers = #tpu.dot_dimension_numbers<[1], [0], [0], [1], [0, 0, 1, 1], [], []>} : vector<16x64xf32>, vector<64x128xf32>, vector<16x128xf32> -> vector<16x128xf32>
    %10 = arith.addf %4, %9 : vector<16x128xf32>
    %c0_11 = arith.constant 0 : index
    %c2 = arith.constant 2 : index
    %c0_12 = arith.constant 0 : index
    %11 = vector.load %arg1[%c0_11, %c2, %c0_12] : memref<1x18x64xf32, #tpu.memory_space<vmem>>, vector<1x16x64xf32>
    %12 = vector.shape_cast %11 : vector<1x16x64xf32> to vector<16x64xf32>
    %c2_13 = arith.constant 2 : index
    %c0_14 = arith.constant 0 : index
    %c0_15 = arith.constant 0 : index
    %13 = vector.load %arg2[%c2_13, %c0_14, %c0_15] : memref<3x64x128xf32, #tpu.memory_space<vmem>>, vector<1x64x128xf32>
    %14 = vector.shape_cast %13 : vector<1x64x128xf32> to vector<64x128xf32>
    %cst_16 = arith.constant dense<0.000000e+00> : vector<16x128xf32>
    %15 = tpu.matmul %12, %14, %cst_16 {dimension_numbers = #tpu.dot_dimension_numbers<[1], [0], [0], [1], [0, 0, 1, 1], [], []>} : vector<16x64xf32>, vector<64x128xf32>, vector<16x128xf32> -> vector<16x128xf32>
    %16 = arith.addf %10, %15 : vector<16x128xf32>
    %c0_17 = arith.constant 0 : index
    %c0_18 = arith.constant 0 : index
    %17 = vector.load %arg3[%c0_17, %c0_18] : memref<1x128xf32, #tpu.memory_space<vmem>>, vector<1x128xf32>
    %18 = vector.broadcast %17 : vector<1x128xf32> to vector<16x128xf32>
    %19 = arith.addf %16, %18 : vector<16x128xf32>
    %cst_19 = arith.constant 0.000000e+00 : f32
    %20 = vector.broadcast %cst_19 : f32 to vector<16x128xf32>
    %21 = arith.maximumf %19, %20 : vector<16x128xf32>
    %cst_20 = arith.constant 0.000000e+00 : f32
    %22 = vector.broadcast %cst_20 : f32 to vector<18x128xf32>
    %c0_21 = arith.constant 0 : index
    %c0_22 = arith.constant 0 : index
    %23 = vector.load %arg9[%c0_21, %c0_22] : memref<18x128xf32, #tpu.memory_space<vmem>>, vector<18x128xf32>
    tpu.vector_store %arg9[%c0_21, %c0_22], %22 {strides = array<i32>} : memref<18x128xf32, #tpu.memory_space<vmem>>, vector<18x128xf32>,
    %c1_23 = arith.constant 1 : index
    %c0_24 = arith.constant 0 : index
    %24 = vector.load %arg9[%c1_23, %c0_24] : memref<18x128xf32, #tpu.memory_space<vmem>>, vector<16x128xf32>
    tpu.vector_store %arg9[%c1_23, %c0_24], %21 {strides = array<i32>} : memref<18x128xf32, #tpu.memory_space<vmem>>, vector<16x128xf32>,
    %c0_25 = arith.constant 0 : index
    %c0_26 = arith.constant 0 : index
    %25 = vector.load %arg9[%c0_25, %c0_26] : memref<18x128xf32, #tpu.memory_space<vmem>>, vector<16x128xf32>
    %c0_27 = arith.constant 0 : index
    %c0_28 = arith.constant 0 : index
    %c0_29 = arith.constant 0 : index
    %26 = vector.load %arg4[%c0_27, %c0_28, %c0_29] : memref<3x128x64xf32, #tpu.memory_space<vmem>>, vector<1x128x64xf32>
    %27 = vector.shape_cast %26 : vector<1x128x64xf32> to vector<128x64xf32>
    %cst_30 = arith.constant dense<0.000000e+00> : vector<16x64xf32>
    %28 = tpu.matmul %25, %27, %cst_30 {dimension_numbers = #tpu.dot_dimension_numbers<[1], [0], [0], [1], [0, 0, 1, 1], [], []>} : vector<16x128xf32>, vector<128x64xf32>, vector<16x64xf32> -> vector<16x64xf32>
    %c1_31 = arith.constant 1 : index
    %c0_32 = arith.constant 0 : index
    %29 = vector.load %arg9[%c1_31, %c0_32] : memref<18x128xf32, #tpu.memory_space<vmem>>, vector<16x128xf32>
    %c1_33 = arith.constant 1 : index
    %c0_34 = arith.constant 0 : index
    %c0_35 = arith.constant 0 : index
    %30 = vector.load %arg4[%c1_33, %c0_34, %c0_35] : memref<3x128x64xf32, #tpu.memory_space<vmem>>, vector<1x128x64xf32>
    %31 = vector.shape_cast %30 : vector<1x128x64xf32> to vector<128x64xf32>
    %cst_36 = arith.constant dense<0.000000e+00> : vector<16x64xf32>
    %32 = tpu.matmul %29, %31, %cst_36 {dimension_numbers = #tpu.dot_dimension_numbers<[1], [0], [0], [1], [0, 0, 1, 1], [], []>} : vector<16x128xf32>, vector<128x64xf32>, vector<16x64xf32> -> vector<16x64xf32>
    %33 = arith.addf %28, %32 : vector<16x64xf32>
    %c2_37 = arith.constant 2 : index
    %c0_38 = arith.constant 0 : index
    %34 = vector.load %arg9[%c2_37, %c0_38] : memref<18x128xf32, #tpu.memory_space<vmem>>, vector<16x128xf32>
    %c2_39 = arith.constant 2 : index
    %c0_40 = arith.constant 0 : index
    %c0_41 = arith.constant 0 : index
    %35 = vector.load %arg4[%c2_39, %c0_40, %c0_41] : memref<3x128x64xf32, #tpu.memory_space<vmem>>, vector<1x128x64xf32>
    %36 = vector.shape_cast %35 : vector<1x128x64xf32> to vector<128x64xf32>
    %cst_42 = arith.constant dense<0.000000e+00> : vector<16x64xf32>
    %37 = tpu.matmul %34, %36, %cst_42 {dimension_numbers = #tpu.dot_dimension_numbers<[1], [0], [0], [1], [0, 0, 1, 1], [], []>} : vector<16x128xf32>, vector<128x64xf32>, vector<16x64xf32> -> vector<16x64xf32>
    %38 = arith.addf %33, %37 : vector<16x64xf32>
    %c0_43 = arith.constant 0 : index
    %c0_44 = arith.constant 0 : index
    %39 = vector.load %arg5[%c0_43, %c0_44] : memref<1x64xf32, #tpu.memory_space<vmem>>, vector<1x64xf32>
    %40 = vector.broadcast %39 : vector<1x64xf32> to vector<16x64xf32>
    %41 = arith.addf %38, %40 : vector<16x64xf32>
    %cst_45 = arith.constant 0.000000e+00 : f32
    %42 = vector.broadcast %cst_45 : f32 to vector<16x64xf32>
    %43 = arith.maximumf %41, %42 : vector<16x64xf32>
    %c0_46 = arith.constant 0 : index
    %c0_47 = arith.constant 0 : index
    %44 = vector.load %arg10[%c0_46, %c0_47] : memref<16x64xf32, #tpu.memory_space<vmem>>, vector<16x64xf32>
    tpu.vector_store %arg10[%c0_46, %c0_47], %43 {strides = array<i32>} : memref<16x64xf32, #tpu.memory_space<vmem>>, vector<16x64xf32>,
    %c0_48 = arith.constant 0 : index
    %c0_49 = arith.constant 0 : index
    %45 = vector.load %arg10[%c0_48, %c0_49] : memref<16x64xf32, #tpu.memory_space<vmem>>, vector<1x64xf32>
    %c0_50 = arith.constant 0 : index
    %c0_51 = arith.constant 0 : index
    %46 = vector.load %arg6[%c0_50, %c0_51] : memref<512x32xf32, #tpu.memory_space<vmem>>, vector<64x32xf32>
    %cst_52 = arith.constant dense<0.000000e+00> : vector<1x32xf32>
    %47 = tpu.matmul %45, %46, %cst_52 {dimension_numbers = #tpu.dot_dimension_numbers<[1], [0], [0], [1], [0, 0, 1, 1], [], []>} : vector<1x64xf32>, vector<64x32xf32>, vector<1x32xf32> -> vector<1x32xf32>
    %c2_53 = arith.constant 2 : index
    %c0_54 = arith.constant 0 : index
    %48 = vector.load %arg10[%c2_53, %c0_54] : memref<16x64xf32, #tpu.memory_space<vmem>>, vector<1x64xf32>
    %c64 = arith.constant 64 : index
    %c0_55 = arith.constant 0 : index
    %49 = vector.load %arg6[%c64, %c0_55] : memref<512x32xf32, #tpu.memory_space<vmem>>, vector<64x32xf32>
    %cst_56 = arith.constant dense<0.000000e+00> : vector<1x32xf32>
    %50 = tpu.matmul %48, %49, %cst_56 {dimension_numbers = #tpu.dot_dimension_numbers<[1], [0], [0], [1], [0, 0, 1, 1], [], []>} : vector<1x64xf32>, vector<64x32xf32>, vector<1x32xf32> -> vector<1x32xf32>
    %51 = arith.addf %47, %50 : vector<1x32xf32>
    %c4 = arith.constant 4 : index
    %c0_57 = arith.constant 0 : index
    %52 = vector.load %arg10[%c4, %c0_57] : memref<16x64xf32, #tpu.memory_space<vmem>>, vector<1x64xf32>
    %c128 = arith.constant 128 : index
    %c0_58 = arith.constant 0 : index
    %53 = vector.load %arg6[%c128, %c0_58] : memref<512x32xf32, #tpu.memory_space<vmem>>, vector<64x32xf32>
    %cst_59 = arith.constant dense<0.000000e+00> : vector<1x32xf32>
    %54 = tpu.matmul %52, %53, %cst_59 {dimension_numbers = #tpu.dot_dimension_numbers<[1], [0], [0], [1], [0, 0, 1, 1], [], []>} : vector<1x64xf32>, vector<64x32xf32>, vector<1x32xf32> -> vector<1x32xf32>
    %55 = arith.addf %51, %54 : vector<1x32xf32>
    %c6 = arith.constant 6 : index
    %c0_60 = arith.constant 0 : index
    %56 = vector.load %arg10[%c6, %c0_60] : memref<16x64xf32, #tpu.memory_space<vmem>>, vector<1x64xf32>
    %c192 = arith.constant 192 : index
    %c0_61 = arith.constant 0 : index
    %57 = vector.load %arg6[%c192, %c0_61] : memref<512x32xf32, #tpu.memory_space<vmem>>, vector<64x32xf32>
    %cst_62 = arith.constant dense<0.000000e+00> : vector<1x32xf32>
    %58 = tpu.matmul %56, %57, %cst_62 {dimension_numbers = #tpu.dot_dimension_numbers<[1], [0], [0], [1], [0, 0, 1, 1], [], []>} : vector<1x64xf32>, vector<64x32xf32>, vector<1x32xf32> -> vector<1x32xf32>
    %59 = arith.addf %55, %58 : vector<1x32xf32>
    %c8 = arith.constant 8 : index
    %c0_63 = arith.constant 0 : index
    %60 = vector.load %arg10[%c8, %c0_63] : memref<16x64xf32, #tpu.memory_space<vmem>>, vector<1x64xf32>
    %c256 = arith.constant 256 : index
    %c0_64 = arith.constant 0 : index
    %61 = vector.load %arg6[%c256, %c0_64] : memref<512x32xf32, #tpu.memory_space<vmem>>, vector<64x32xf32>
    %cst_65 = arith.constant dense<0.000000e+00> : vector<1x32xf32>
    %62 = tpu.matmul %60, %61, %cst_65 {dimension_numbers = #tpu.dot_dimension_numbers<[1], [0], [0], [1], [0, 0, 1, 1], [], []>} : vector<1x64xf32>, vector<64x32xf32>, vector<1x32xf32> -> vector<1x32xf32>
    %63 = arith.addf %59, %62 : vector<1x32xf32>
    %c10 = arith.constant 10 : index
    %c0_66 = arith.constant 0 : index
    %64 = vector.load %arg10[%c10, %c0_66] : memref<16x64xf32, #tpu.memory_space<vmem>>, vector<1x64xf32>
    %c320 = arith.constant 320 : index
    %c0_67 = arith.constant 0 : index
    %65 = vector.load %arg6[%c320, %c0_67] : memref<512x32xf32, #tpu.memory_space<vmem>>, vector<64x32xf32>
    %cst_68 = arith.constant dense<0.000000e+00> : vector<1x32xf32>
    %66 = tpu.matmul %64, %65, %cst_68 {dimension_numbers = #tpu.dot_dimension_numbers<[1], [0], [0], [1], [0, 0, 1, 1], [], []>} : vector<1x64xf32>, vector<64x32xf32>, vector<1x32xf32> -> vector<1x32xf32>
    %67 = arith.addf %63, %66 : vector<1x32xf32>
    %c12 = arith.constant 12 : index
    %c0_69 = arith.constant 0 : index
    %68 = vector.load %arg10[%c12, %c0_69] : memref<16x64xf32, #tpu.memory_space<vmem>>, vector<1x64xf32>
    %c384 = arith.constant 384 : index
    %c0_70 = arith.constant 0 : index
    %69 = vector.load %arg6[%c384, %c0_70] : memref<512x32xf32, #tpu.memory_space<vmem>>, vector<64x32xf32>
    %cst_71 = arith.constant dense<0.000000e+00> : vector<1x32xf32>
    %70 = tpu.matmul %68, %69, %cst_71 {dimension_numbers = #tpu.dot_dimension_numbers<[1], [0], [0], [1], [0, 0, 1, 1], [], []>} : vector<1x64xf32>, vector<64x32xf32>, vector<1x32xf32> -> vector<1x32xf32>
    %71 = arith.addf %67, %70 : vector<1x32xf32>
    %c14 = arith.constant 14 : index
    %c0_72 = arith.constant 0 : index
    %72 = vector.load %arg10[%c14, %c0_72] : memref<16x64xf32, #tpu.memory_space<vmem>>, vector<1x64xf32>
    %c448 = arith.constant 448 : index
    %c0_73 = arith.constant 0 : index
    %73 = vector.load %arg6[%c448, %c0_73] : memref<512x32xf32, #tpu.memory_space<vmem>>, vector<64x32xf32>
    %cst_74 = arith.constant dense<0.000000e+00> : vector<1x32xf32>
    %74 = tpu.matmul %72, %73, %cst_74 {dimension_numbers = #tpu.dot_dimension_numbers<[1], [0], [0], [1], [0, 0, 1, 1], [], []>} : vector<1x64xf32>, vector<64x32xf32>, vector<1x32xf32> -> vector<1x32xf32>
    %75 = arith.addf %71, %74 : vector<1x32xf32>
    %c0_75 = arith.constant 0 : index
    %c0_76 = arith.constant 0 : index
    %76 = vector.load %arg7[%c0_75, %c0_76] : memref<1x32xf32, #tpu.memory_space<vmem>>, vector<1x32xf32>
    %77 = arith.addf %75, %76 : vector<1x32xf32>
    %c0_77 = arith.constant 0 : index
    %c0_78 = arith.constant 0 : index
    %c0_79 = arith.constant 0 : index
    %78 = vector.load %arg8[%c0_77, %c0_78, %c0_79] : memref<1x1x32xf32, #tpu.memory_space<vmem>>, vector<1x1x32xf32>
    %79 = vector.shape_cast %78 : vector<1x1x32xf32> to vector<1x32xf32>
    %80 = vector.shape_cast %77 : vector<1x32xf32> to vector<1x1x32xf32>
    tpu.vector_store %arg8[%c0_77, %c0_78, %c0_79], %80 {strides = array<i32>} : memref<1x1x32xf32, #tpu.memory_space<vmem>>, vector<1x1x32xf32>,
    return
  }
  func.func @transform_0(%arg0: i32) -> (i32, i32, i32) {
    %c0_i32 = arith.constant 0 : i32
    %c0_i32_0 = arith.constant 0 : i32
    %c0_i32_1 = arith.constant 0 : i32
    return %arg0, %c0_i32, %c0_i32_0 : i32, i32, i32
  }
  func.func @transform_1(%arg0: i32) -> (i32, i32, i32) {
    %c0_i32 = arith.constant 0 : i32
    %c0_i32_0 = arith.constant 0 : i32
    %c0_i32_1 = arith.constant 0 : i32
    %c0_i32_2 = arith.constant 0 : i32
    return %c0_i32, %c0_i32_0, %c0_i32_1 : i32, i32, i32
  }
  func.func @transform_2(%arg0: i32) -> (i32, i32) {
    %c0_i32 = arith.constant 0 : i32
    %c0_i32_0 = arith.constant 0 : i32
    %c0_i32_1 = arith.constant 0 : i32
    return %c0_i32, %c0_i32_0 : i32, i32
  }
  func.func @transform_3(%arg0: i32) -> (i32, i32, i32) {
    %c0_i32 = arith.constant 0 : i32
    %c0_i32_0 = arith.constant 0 : i32
    %c0_i32_1 = arith.constant 0 : i32
    %c0_i32_2 = arith.constant 0 : i32
    return %c0_i32, %c0_i32_0, %c0_i32_1 : i32, i32, i32
  }
  func.func @transform_4(%arg0: i32) -> (i32, i32) {
    %c0_i32 = arith.constant 0 : i32
    %c0_i32_0 = arith.constant 0 : i32
    %c0_i32_1 = arith.constant 0 : i32
    return %c0_i32, %c0_i32_0 : i32, i32
  }
  func.func @transform_5(%arg0: i32) -> (i32, i32) {
    %c0_i32 = arith.constant 0 : i32
    %c0_i32_0 = arith.constant 0 : i32
    %c0_i32_1 = arith.constant 0 : i32
    return %c0_i32, %c0_i32_0 : i32, i32
  }
  func.func @transform_6(%arg0: i32) -> (i32, i32) {
    %c0_i32 = arith.constant 0 : i32
    %c0_i32_0 = arith.constant 0 : i32
    %c0_i32_1 = arith.constant 0 : i32
    return %c0_i32, %c0_i32_0 : i32, i32
  }
  func.func @transform_7(%arg0: i32) -> (i32, i32, i32) {
    %c0_i32 = arith.constant 0 : i32
    %c0_i32_0 = arith.constant 0 : i32
    %c0_i32_1 = arith.constant 0 : i32
    return %arg0, %c0_i32, %c0_i32_0 : i32, i32, i32
  }
}

</mosaic_0001>

<llo_original>
// kernel: cnn_forward.1
$region0: #{cnn_forward.1}
  #allocation0 [shape = 'u32[]', space=smem, size = 0x4, offset = 0x4, fixed_abs, tag = 'smem constant byte address 0x4 - core index']
  #allocation1 [shape = 'u32[72,128]{1,0:T(1,128)}', space=vmem, size = 0x9000, scoped, tag = 'internal scratch']
  #allocation2 [shape = 'f32[18,128]{1,0:T(8,128)}', space=vmem, size = 0x3000, scoped, tag = 'scratch operand']
  #allocation3 [shape = 'f32[16,64]{1,0:T(8,128)}', space=vmem, size = 0x2000, scoped, tag = 'scratch operand']
  %s0 = inlined_call_operand.vmem [shape: f32[2,18,64], index: 0, kind: input, shape index: {}]
  %s1 = inlined_call_operand.hbm [shape: f32[3,64,128], index: 1, kind: input, shape index: {}]
  %s2 = inlined_call_operand.vmem [shape: f32[1,128], index: 2, kind: input, shape index: {}]
  %s3 = inlined_call_operand.vmem [shape: f32[3,128,64], index: 3, kind: input, shape index: {}]
  %s4 = inlined_call_operand.vmem [shape: f32[1,64], index: 4, kind: input, shape index: {}]
  %s5 = inlined_call_operand.hbm [shape: f32[512,32], index: 5, kind: input, shape index: {}]
  %s6 = inlined_call_operand.vmem [shape: f32[1,32], index: 6, kind: input, shape index: {}]
  %s7 = inlined_call_operand.hbm [shape: f32[2,1,32], index: 7, kind: output, shape index: {}]
  %s8 = sld [smem:[#allocation0]]
  $region69: #{cnn_forward.1} parent=0
    _
  %s10 = ssub.s32 1, %s8
  %s11 = scalar_select 0, %s10, %s8
  $region1: #{cnn_forward.1} parent=0
    #allocation4 [shape = 'u8[98304]{0}', space=vmem, size = 0x18000, scoped, tag = 'input window, operand 1, single buffered']
    #allocation5 [shape = 's32[2]{0}', space=sflag, size = 0x8, scoped, tag = 'scoped memory for cnn_forward.1']
    #allocation6 [shape = 's32[2]{0}', space=sflag, size = 0x8, scoped, tag = 'scoped memory for cnn_forward.1']
    #allocation7 [shape = 'u8[262144]{0}', space=vmem, size = 0x40000, scoped, tag = 'input window, operand 5, single buffered']
    #allocation8 [shape = 's32[1]{0}', space=sflag, size = 0x4, scoped, tag = 'scoped memory for cnn_forward.1']
    #allocation9 [shape = 'u8[1024]{0}', space=vmem, size = 0x400, scoped, tag = 'output window, operand 0']
    %12 = vsyncpa [#allocation5], 0
    %13 = vsyncpa [#allocation8], 0
    %14 = vsyncpa [#allocation6], 0
    %s15 = scalar_lea.sflag [#allocation6], 1
    %16 = vsyncpa %s15, 0
    loop: start=0, step=1, limit=4
    $region2: #{cnn_forward.1} parent=1 // loop_pre_header
      _
    $region3: #{cnn_forward.1} parent=1 // loop_header
      %s18 = sphi 0, %s22
      %p19 = scmp.ge.s32.totalorder %s18, 4
      %s28 = sphi 0, %s30
      %s31 = sphi 0, %s28
      %s32 = sphi 0, %s31
      %s48 = sphi 0, %s32
      %s52 = sphi 0, %s52
      %s54 = sphi 0, %s52
      %s55 = sphi 0, %s54
      %s69 = sphi 0, %s55
      %s73 = sphi 0, %s73
      %s75 = sphi 0, %s73
      %s76 = sphi 0, %s75
      %s90 = sphi 0, %s76
      %s94 = sphi 0, %s94
      %s96 = sphi 0, %s94
      %s97 = sphi 0, %s96
      %s111 = sphi 0, %s97
      %s115 = sphi 0, %s115
      %s117 = sphi 0, %s115
      %s118 = sphi 0, %s117
      %s132 = sphi 0, %s118
      %s136 = sphi 0, %s136
      %s138 = sphi 0, %s136
      %s139 = sphi 0, %s138
      %s153 = sphi 0, %s139
      %s157 = sphi 0, %s157
      %s159 = sphi 0, %s157
      %s160 = sphi 0, %s159
      %s174 = sphi 0, %s160
      %s180 = sphi 0, %s182
      %s183 = sphi 0, %s180
      %s184 = sphi 0, %s183
      %s200 = sphi 0, %s184
    $region4: #{cnn_forward.1} parent=1 // loop_header_branch
      %21 = sbr.rel (%p19) target = $region8
    $region5: #{cnn_forward.1} parent=1 // loop_body
      %s23 = ssub.s32 %s18, 1
      %s24 = ssub.s32 %s18, 2
      %s25 = sadd.s32 %s18, 1
      %s26 = ssub.s32 %s18, %s25
      %p27 = scmp.eq.s32.totalorder %s26, 0
      %s29 = sadd.s32 %s28, 1
      %s30 = scalar_select %p27, %s28, %s29
      %p33 = pneg %p27
      %p34 = scmp.eq.s32.totalorder %s18, 1
      %p35 = por %p33, %p34
      %p36 = scmp.ne.s32.totalorder %s28, %s31
      %p37 = scmp.eq.s32.totalorder %s18, 0
      %p38 = por %p36, %p37
      %p39 = scmp.ne.s32.totalorder %s28, %s31
      %p40 = scmp.eq.s32.totalorder %s23, 1
      %p41 = por %p39, %p40
      %p42 = scmp.ne.s32.totalorder %s31, %s32
      %p43 = scmp.eq.s32.totalorder %s23, 0
      %p44 = por %p42, %p43
      %p45 = scmp.ne.s32.totalorder %s31, %s32
      %p46 = scmp.eq.s32.totalorder %s24, 1
      %p47 = por %p45, %p46
      %p49 = scmp.ne.s32.totalorder %s32, %s48
      %p50 = scmp.eq.s32.totalorder %s24, 0
      %p51 = por %p49, %p50
      %s53 = sadd.s32 %s52, 1
      %p56 = scmp.eq.s32.totalorder %s18, 1
      %p57 = scmp.ne.s32.totalorder %s52, %s54
      %p58 = scmp.eq.s32.totalorder %s18, 0
      %p59 = por %p57, %p58
      %p60 = scmp.ne.s32.totalorder %s52, %s54
      %p61 = scmp.eq.s32.totalorder %s23, 1
      %p62 = por %p60, %p61
      %p63 = scmp.ne.s32.totalorder %s54, %s55
      %p64 = scmp.eq.s32.totalorder %s23, 0
      %p65 = por %p63, %p64
      %p66 = scmp.ne.s32.totalorder %s54, %s55
      %p67 = scmp.eq.s32.totalorder %s24, 1
      %p68 = por %p66, %p67
      %p70 = scmp.ne.s32.totalorder %s55, %s69
      %p71 = scmp.eq.s32.totalorder %s24, 0
      %p72 = por %p70, %p71
      %s74 = sadd.s32 %s73, 1
      %p77 = scmp.eq.s32.totalorder %s18, 1
      %p78 = scmp.ne.s32.totalorder %s73, %s75
      %p79 = scmp.eq.s32.totalorder %s18, 0
      %p80 = por %p78, %p79
      %p81 = scmp.ne.s32.totalorder %s73, %s75
      %p82 = scmp.eq.s32.totalorder %s23, 1
      %p83 = por %p81, %p82
      %p84 = scmp.ne.s32.totalorder %s75, %s76
      %p85 = scmp.eq.s32.totalorder %s23, 0
      %p86 = por %p84, %p85
      %p87 = scmp.ne.s32.totalorder %s75, %s76
      %p88 = scmp.eq.s32.totalorder %s24, 1
      %p89 = por %p87, %p88
      %p91 = scmp.ne.s32.totalorder %s76, %s90
      %p92 = scmp.eq.s32.totalorder %s24, 0
      %p93 = por %p91, %p92
      %s95 = sadd.s32 %s94, 1
      %p98 = scmp.eq.s32.totalorder %s18, 1
      %p99 = scmp.ne.s32.totalorder %s94, %s96
      %p100 = scmp.eq.s32.totalorder %s18, 0
      %p101 = por %p99, %p100
      %p102 = scmp.ne.s32.totalorder %s94, %s96
      %p103 = scmp.eq.s32.totalorder %s23, 1
      %p104 = por %p102, %p103
      %p105 = scmp.ne.s32.totalorder %s96, %s97
      %p106 = scmp.eq.s32.totalorder %s23, 0
      %p107 = por %p105, %p106
      %p108 = scmp.ne.s32.totalorder %s96, %s97
      %p109 = scmp.eq.s32.totalorder %s24, 1
      %p110 = por %p108, %p109
      %p112 = scmp.ne.s32.totalorder %s97, %s111
      %p113 = scmp.eq.s32.totalorder %s24, 0
      %p114 = por %p112, %p113
      %s116 = sadd.s32 %s115, 1
      %p119 = scmp.eq.s32.totalorder %s18, 1
      %p120 = scmp.ne.s32.totalorder %s115, %s117
      %p121 = scmp.eq.s32.totalorder %s18, 0
      %p122 = por %p120, %p121
      %p123 = scmp.ne.s32.totalorder %s115, %s117
      %p124 = scmp.eq.s32.totalorder %s23, 1
      %p125 = por %p123, %p124
      %p126 = scmp.ne.s32.totalorder %s117, %s118
      %p127 = scmp.eq.s32.totalorder %s23, 0
      %p128 = por %p126, %p127
      %p129 = scmp.ne.s32.totalorder %s117, %s118
      %p130 = scmp.eq.s32.totalorder %s24, 1
      %p131 = por %p129, %p130
      %p133 = scmp.ne.s32.totalorder %s118, %s132
      %p134 = scmp.eq.s32.totalorder %s24, 0
      %p135 = por %p133, %p134
      %s137 = sadd.s32 %s136, 1
      %p140 = scmp.eq.s32.totalorder %s18, 1
      %p141 = scmp.ne.s32.totalorder %s136, %s138
      %p142 = scmp.eq.s32.totalorder %s18, 0
      %p143 = por %p141, %p142
      %p144 = scmp.ne.s32.totalorder %s136, %s138
      %p145 = scmp.eq.s32.totalorder %s23, 1
      %p146 = por %p144, %p145
      %p147 = scmp.ne.s32.totalorder %s138, %s139
      %p148 = scmp.eq.s32.totalorder %s23, 0
      %p149 = por %p147, %p148
      %p150 = scmp.ne.s32.totalorder %s138, %s139
      %p151 = scmp.eq.s32.totalorder %s24, 1
      %p152 = por %p150, %p151
      %p154 = scmp.ne.s32.totalorder %s139, %s153
      %p155 = scmp.eq.s32.totalorder %s24, 0
      %p156 = por %p154, %p155
      %s158 = sadd.s32 %s157, 1
      %p161 = scmp.eq.s32.totalorder %s18, 1
      %p162 = scmp.ne.s32.totalorder %s157, %s159
      %p163 = scmp.eq.s32.totalorder %s18, 0
      %p164 = por %p162, %p163
      %p165 = scmp.ne.s32.totalorder %s157, %s159
      %p166 = scmp.eq.s32.totalorder %s23, 1
      %p167 = por %p165, %p166
      %p168 = scmp.ne.s32.totalorder %s159, %s160
      %p169 = scmp.eq.s32.totalorder %s23, 0
      %p170 = por %p168, %p169
      %p171 = scmp.ne.s32.totalorder %s159, %s160
      %p172 = scmp.eq.s32.totalorder %s24, 1
      %p173 = por %p171, %p172
      %p175 = scmp.ne.s32.totalorder %s160, %s174
      %p176 = scmp.eq.s32.totalorder %s24, 0
      %p177 = por %p175, %p176
      %s178 = ssub.s32 %s18, %s25
      %p179 = scmp.eq.s32.totalorder %s178, 0
      %s181 = sadd.s32 %s180, 1
      %s182 = scalar_select %p179, %s180, %s181
      %p185 = pneg %p179
      %p186 = scmp.eq.s32.totalorder %s18, 1
      %p187 = por %p185, %p186
      %p188 = scmp.ne.s32.totalorder %s180, %s183
      %p189 = scmp.eq.s32.totalorder %s18, 0
      %p190 = por %p188, %p189
      %p191 = scmp.ne.s32.totalorder %s180, %s183
      %p192 = scmp.eq.s32.totalorder %s23, 1
      %p193 = por %p191, %p192
      %p194 = scmp.ne.s32.totalorder %s183, %s184
      %p195 = scmp.eq.s32.totalorder %s23, 0
      %p196 = por %p194, %p195
      %p197 = scmp.ne.s32.totalorder %s183, %s184
      %p198 = scmp.eq.s32.totalorder %s24, 1
      %p199 = por %p197, %p198
      %p201 = scmp.ne.s32.totalorder %s184, %s200
      %p202 = scmp.eq.s32.totalorder %s24, 0
      %p203 = por %p201, %p202
      %p204 = scmp.le.s32.totalorder 1, %s18
      %p205 = scmp.lt.s32.totalorder %s18, 3
      %p206 = pnand %p204, %p205
      %p207 = pneg %p206
      // Predicated region
      $region9: #{cnn_forward.1} parent=5 // pred_check
        _
      $region10: #{cnn_forward.1} parent=5 // pred_check_branch
        %209 = sbr.rel (%p206) target = $region12
      $region11: #{cnn_forward.1} parent=5 // pred_region
        %s210 = ssub.s32 %s18, 1
        // Predicated region
        $region13: #{cnn_forward.1} parent=11 // pred_check
          %p211 = pneg %p65
        $region14: #{cnn_forward.1} parent=11 // pred_check_branch
          %213 = sbr.rel (%p211) target = $region16
        $region15: #{cnn_forward.1} parent=11 // pred_region
          %215 = vsyncadd [#allocation5], 0
          %s216 = sshll.u32 %s1, 4
          %s217 = int_to_ptr.hbm [resolvable:$true] %s216
          %s218 = sshll.u32 [#allocation4], 4
          %s219 = int_to_ptr.vmem [resolvable:$true] %s218
          %224 = dma.hbm_to_vmem [thread:$0]  %s217, 3072, %s219, [#allocation5], 128, 128, 8
        $region16: #{cnn_forward.1} parent=11 // pred_fallthru
          _
        // Predicated region
        $region17: #{cnn_forward.1} parent=11 // pred_check
          %p225 = pneg %p86
        $region18: #{cnn_forward.1} parent=11 // pred_check_branch
          %227 = sbr.rel (%p225) target = $region20
        $region19: #{cnn_forward.1} parent=11 // pred_region
          _
        $region20: #{cnn_forward.1} parent=11 // pred_fallthru
          _
        // Predicated region
        $region21: #{cnn_forward.1} parent=11 // pred_check
          %p228 = pneg %p107
        $region22: #{cnn_forward.1} parent=11 // pred_check_branch
          %230 = sbr.rel (%p228) target = $region24
        $region23: #{cnn_forward.1} parent=11 // pred_region
          _
        $region24: #{cnn_forward.1} parent=11 // pred_fallthru
          _
        // Predicated region
        $region25: #{cnn_forward.1} parent=11 // pred_check
          %p231 = pneg %p128
        $region26: #{cnn_forward.1} parent=11 // pred_check_branch
          %233 = sbr.rel (%p231) target = $region28
        $region27: #{cnn_forward.1} parent=11 // pred_region
          _
        $region28: #{cnn_forward.1} parent=11 // pred_fallthru
          _
        // Predicated region
        $region29: #{cnn_forward.1} parent=11 // pred_check
          %p234 = pneg %p149
        $region30: #{cnn_forward.1} parent=11 // pred_check_branch
          %236 = sbr.rel (%p234) target = $region32
        $region31: #{cnn_forward.1} parent=11 // pred_region
          %238 = vsyncadd [#allocation8], 0
          %s239 = sshll.u32 %s5, 4
          %s240 = int_to_ptr.hbm [resolvable:$true] %s239
          %s241 = sshll.u32 [#allocation7], 4
          %s242 = int_to_ptr.vmem [resolvable:$true] %s241
          %247 = dma.hbm_to_vmem [thread:$0]  %s240, 8192, %s242, [#allocation8], 128, 128, 8
        $region32: #{cnn_forward.1} parent=11 // pred_fallthru
          _
        // Predicated region
        $region33: #{cnn_forward.1} parent=11 // pred_check
          %p248 = pneg %p170
        $region34: #{cnn_forward.1} parent=11 // pred_check_branch
          %250 = sbr.rel (%p248) target = $region36
        $region35: #{cnn_forward.1} parent=11 // pred_region
          _
        $region36: #{cnn_forward.1} parent=11 // pred_fallthru
          _
      $region12: #{cnn_forward.1} parent=5 // pred_fallthru
        _
      %p251 = scmp.lt.s32.totalorder %s18, 2
      // Predicated region
      $region37: #{cnn_forward.1} parent=5 // pred_check
        %p252 = pneg %p251
      $region38: #{cnn_forward.1} parent=5 // pred_check_branch
        %254 = sbr.rel (%p252) target = $region40
      $region39: #{cnn_forward.1} parent=5 // pred_region
        // Predicated region
        $region41: #{cnn_forward.1} parent=39 // pred_check
          %p255 = pneg %p38
        $region42: #{cnn_forward.1} parent=39 // pred_check_branch
          %257 = sbr.rel (%p255) target = $region44
        $region43: #{cnn_forward.1} parent=39 // pred_region
          %p258 = scmp.lt.s32.totalorder %s18, 1
          %s259 = scalar_select %p258, %s18, 1
          %s260 = smul.addr %s259, 3
          %s261 = smul.addr %s260, 8
          %s262 = scalar_lea.vmem %s0, %s261
        $region44: #{cnn_forward.1} parent=39 // pred_fallthru
          _
      $region40: #{cnn_forward.1} parent=5 // pred_fallthru
        _
      %p263 = scmp.le.s32.totalorder 1, %s18
      %p264 = scmp.lt.s32.totalorder %s18, 3
      %p265 = pnand %p263, %p264
      %p266 = pneg %p265
      // Predicated region
      $region45: #{cnn_forward.1} parent=5 // pred_check
        _
      $region46: #{cnn_forward.1} parent=5 // pred_check_branch
        %268 = sbr.rel (%p265) target = $region48
      $region47: #{cnn_forward.1} parent=5 // pred_region
        %s269 = ssub.s32 %s18, 1
        // Predicated region
        $region49: #{cnn_forward.1} parent=47 // pred_check
          %p270 = pneg %p65
        $region50: #{cnn_forward.1} parent=47 // pred_check_branch
          %272 = sbr.rel (%p270) target = $region52
        $region51: #{cnn_forward.1} parent=47 // pred_region
          %274 = dma.done [#allocation5], 3072
        $region52: #{cnn_forward.1} parent=47 // pred_fallthru
          _
        // Predicated region
        $region53: #{cnn_forward.1} parent=47 // pred_check
          %p275 = pneg %p149
        $region54: #{cnn_forward.1} parent=47 // pred_check_branch
          %277 = sbr.rel (%p275) target = $region56
        $region55: #{cnn_forward.1} parent=47 // pred_region
          %279 = dma.done [#allocation8], 8192
        $region56: #{cnn_forward.1} parent=47 // pred_fallthru
          _
        %p280 = scmp.lt.s32.totalorder %s23, 1
        %s281 = scalar_select %p280, %s23, 1
        %s282 = smul.addr %s281, 3
        %s283 = smul.addr %s282, 8
        %s284 = scalar_lea.vmem %s0, %s283
        %p285 = pneg %p44
        %p286 = pneg %p41
        %p287 = pneg %p65
        %p288 = pneg %p62
        %p289 = pneg %p86
        %p290 = pneg %p83
        %p291 = pneg %p107
        %p292 = pneg %p104
        %p293 = pneg %p128
        %p294 = pneg %p125
        %p295 = pneg %p149
        %p296 = pneg %p146
        %p297 = pneg %p170
        %p298 = pneg %p167
        %p299 = pneg %p196
        %p300 = pneg %p193
        %s301 = sand.u32 %s183, 1
        %s302 = scalar_lea.sflag [#allocation6], %s301
        %s303 = sand.u32 %s183, 1
        %s304 = scalar_lea.vmem [#allocation9], %s303
        %p305 = scmp.lt.s32.totalorder %s23, 1
        %s306 = scalar_select %p305, %s23, 1
        %s307 = smul.addr %s306, 3
        %s308 = smul.addr %s307, 8
        %s309 = scalar_lea.vmem %s0, %s308
        %v310 = vld [vmem:[%s309] sm:$0xff]
        %v311 = vld [vmem:[%s309 + $0x8] sm:$0xff]
        %v312 = vld [vmem:[#allocation4] sm:$0xff]
        %v313 = vld [vmem:[#allocation4 + $0x8] sm:$0xff]
        %v314 = vld [vmem:[#allocation4 + $0x10] sm:$0xff]
        %v315 = vld [vmem:[#allocation4 + $0x18] sm:$0xff]
        %v316 = vld [vmem:[#allocation4 + $0x20] sm:$0xff]
        %v317 = vld [vmem:[#allocation4 + $0x28] sm:$0xff]
        %v318 = vld [vmem:[#allocation4 + $0x30] sm:$0xff]
        %v319 = vld [vmem:[#allocation4 + $0x38] sm:$0xff]
        %v320 = vld [vmem:[%s309 + $0x1] sm:$0xff]
        %v321 = vld [vmem:[%s309 + $0x9] sm:$0xff]
        %s322 = scalar_lea.vmem [#allocation4], 64
        %v323 = vld [vmem:[%s322] sm:$0xff]
        %v324 = vld [vmem:[%s322 + $0x8] sm:$0xff]
        %v325 = vld [vmem:[%s322 + $0x10] sm:$0xff]
        %v326 = vld [vmem:[%s322 + $0x18] sm:$0xff]
        %v327 = vld [vmem:[%s322 + $0x20] sm:$0xff]
        %v328 = vld [vmem:[%s322 + $0x28] sm:$0xff]
        %v329 = vld [vmem:[%s322 + $0x30] sm:$0xff]
        %v330 = vld [vmem:[%s322 + $0x38] sm:$0xff]
        %vm331 = vcmask 523264
        %v333 = vsel %vm331, %v320, 0
        %v336 = vsel %vm331, %v321, 0
        %338 = vmatpush.msra.mxu0 0.0
        %339 = vmatpush.msra.mxu0 0.0
        %340 = vmatpush.msra.mxu0 0.0
        %341 = vmatpush.msra.mxu0 0.0
        %342 = vmatpush.msra.mxu0 0.0
        %343 = vmatpush.msra.mxu0 0.0
        %344 = vmatpush.msra.mxu0 0.0
        %345 = vmatpush.msra.mxu0 0.0
        %346 = vmatpush.msra.mxu0 %v330
        %347 = vmatpush.msra.mxu0 %v329
        %348 = vmatpush.msra.mxu0 %v328
        %349 = vmatpush.msra.mxu0 %v327
        %350 = vmatpush.msra.mxu0 %v326
        %351 = vmatpush.msra.mxu0 %v325
        %352 = vmatpush.msra.mxu0 %v324
        %353 = vmatpush.msra.mxu0 %v323
        %354 = vmatmul.f32.gmra.mxu0 %v333
        %v355 = vpop.f32.mrf.mxu0
        %v356 = vadd.f32 0.0, %v355
        %357 = vmatmul.f32.gmra.mxu0 %v336
        %v358 = vpop.f32.mrf.mxu0
        %v359 = vadd.f32 0.0, %v358
        %360 = vdwg.mxu0
        %v362 = vsel %vm331, %v310, 0
        %v365 = vsel %vm331, %v311, 0
        %367 = vmatpush.msra.mxu0 0.0
        %368 = vmatpush.msra.mxu0 0.0
        %369 = vmatpush.msra.mxu0 0.0
        %370 = vmatpush.msra.mxu0 0.0
        %371 = vmatpush.msra.mxu0 0.0
        %372 = vmatpush.msra.mxu0 0.0
        %373 = vmatpush.msra.mxu0 0.0
        %374 = vmatpush.msra.mxu0 0.0
        %375 = vmatpush.msra.mxu0 %v319
        %376 = vmatpush.msra.mxu0 %v318
        %377 = vmatpush.msra.mxu0 %v317
        %378 = vmatpush.msra.mxu0 %v316
        %379 = vmatpush.msra.mxu0 %v315
        %380 = vmatpush.msra.mxu0 %v314
        %381 = vmatpush.msra.mxu0 %v313
        %382 = vmatpush.msra.mxu0 %v312
        %383 = vmatmul.f32.gmra.mxu0 %v362
        %v384 = vpop.f32.mrf.mxu0
        %v385 = vadd.f32 %v356, %v384
        %386 = vmatmul.f32.gmra.mxu0 %v365
        %v387 = vpop.f32.mrf.mxu0
        %v388 = vadd.f32 %v359, %v387
        %389 = vdwg.mxu0
        %v390 = vld [vmem:[%s309 + $0x2] sm:$0xff]
        %v391 = vld [vmem:[%s309 + $0xa] sm:$0xff]
        %s392 = scalar_lea.vmem [#allocation4], 128
        %v393 = vld [vmem:[%s392] sm:$0xff]
        %v394 = vld [vmem:[%s392 + $0x8] sm:$0xff]
        %v395 = vld [vmem:[%s392 + $0x10] sm:$0xff]
        %v396 = vld [vmem:[%s392 + $0x18] sm:$0xff]
        %v397 = vld [vmem:[%s392 + $0x20] sm:$0xff]
        %v398 = vld [vmem:[%s392 + $0x28] sm:$0xff]
        %v399 = vld [vmem:[%s392 + $0x30] sm:$0xff]
        %v400 = vld [vmem:[%s392 + $0x38] sm:$0xff]
        %v402 = vsel %vm331, %v390, 0
        %v405 = vsel %vm331, %v391, 0
        %407 = vmatpush.msra.mxu0 0.0
        %408 = vmatpush.msra.mxu0 0.0
        %409 = vmatpush.msra.mxu0 0.0
        %410 = vmatpush.msra.mxu0 0.0
        %411 = vmatpush.msra.mxu0 0.0
        %412 = vmatpush.msra.mxu0 0.0
        %413 = vmatpush.msra.mxu0 0.0
        %414 = vmatpush.msra.mxu0 0.0
        %415 = vmatpush.msra.mxu0 %v400
        %416 = vmatpush.msra.mxu0 %v399
        %417 = vmatpush.msra.mxu0 %v398
        %418 = vmatpush.msra.mxu0 %v397
        %419 = vmatpush.msra.mxu0 %v396
        %420 = vmatpush.msra.mxu0 %v395
        %421 = vmatpush.msra.mxu0 %v394
        %422 = vmatpush.msra.mxu0 %v393
        %423 = vmatmul.f32.gmra.mxu0 %v402
        %v424 = vpop.f32.mrf.mxu0
        %v425 = vadd.f32 0.0, %v424
        %426 = vmatmul.f32.gmra.mxu0 %v405
        %v427 = vpop.f32.mrf.mxu0
        %v428 = vadd.f32 0.0, %v427
        %429 = vdwg.mxu0
        %v430 = vadd.f32 %v385, %v425
        %v431 = vadd.f32 %v388, %v428
        %v432 = vld [vmem:[%s2] sm:$0x1]
        %v434 = vperm.slane %v432, 0
        %v436 = vadd.f32 %v430, %v434
        %v437 = vadd.f32 %v431, %v434
        %v438 = vmax.f32 %v436, 0.0
        %v439 = vmax.f32 %v437, 0.0
        %440 = vst [vmem:[#allocation2] sm:$0xff] 0.0
        %441 = vst [vmem:[#allocation2 + $0x8] sm:$0xff] 0.0
        %442 = vst [vmem:[#allocation2 + $0x10] sm:$0x3] 0.0
        %443 = vst [vmem:[#allocation2 + $0x1] sm:$0xff] %v438
        %444 = vst [vmem:[#allocation2 + $0x9] sm:$0xff] %v439
        %v445 = vld [vmem:[#allocation2] sm:$0xff]
        %v446 = vld [vmem:[#allocation2 + $0x8] sm:$0xff]
        %v447 = vld [vmem:[%s3] sm:$0xff]
        %v448 = vld [vmem:[%s3 + $0x8] sm:$0xff]
        %v449 = vld [vmem:[%s3 + $0x10] sm:$0xff]
        %v450 = vld [vmem:[%s3 + $0x18] sm:$0xff]
        %v451 = vld [vmem:[%s3 + $0x20] sm:$0xff]
        %v452 = vld [vmem:[%s3 + $0x28] sm:$0xff]
        %v453 = vld [vmem:[%s3 + $0x30] sm:$0xff]
        %v454 = vld [vmem:[%s3 + $0x38] sm:$0xff]
        %v455 = vld [vmem:[%s3 + $0x40] sm:$0xff]
        %v456 = vld [vmem:[%s3 + $0x48] sm:$0xff]
        %v457 = vld [vmem:[%s3 + $0x50] sm:$0xff]
        %v458 = vld [vmem:[%s3 + $0x58] sm:$0xff]
        %v459 = vld [vmem:[%s3 + $0x60] sm:$0xff]
        %v460 = vld [vmem:[%s3 + $0x68] sm:$0xff]
        %v461 = vld [vmem:[%s3 + $0x70] sm:$0xff]
        %v462 = vld [vmem:[%s3 + $0x78] sm:$0xff]
        %v463 = vld [vmem:[#allocation2 + $0x1] sm:$0xff]
        %v464 = vld [vmem:[#allocation2 + $0x9] sm:$0xff]
        %s465 = scalar_lea.vmem %s3, 128
        %v466 = vld [vmem:[%s465] sm:$0xff]
        %v467 = vld [vmem:[%s465 + $0x8] sm:$0xff]
        %v468 = vld [vmem:[%s465 + $0x10] sm:$0xff]
        %v469 = vld [vmem:[%s465 + $0x18] sm:$0xff]
        %v470 = vld [vmem:[%s465 + $0x20] sm:$0xff]
        %v471 = vld [vmem:[%s465 + $0x28] sm:$0xff]
        %v472 = vld [vmem:[%s465 + $0x30] sm:$0xff]
        %v473 = vld [vmem:[%s465 + $0x38] sm:$0xff]
        %v474 = vld [vmem:[%s465 + $0x40] sm:$0xff]
        %v475 = vld [vmem:[%s465 + $0x48] sm:$0xff]
        %v476 = vld [vmem:[%s465 + $0x50] sm:$0xff]
        %v477 = vld [vmem:[%s465 + $0x58] sm:$0xff]
        %v478 = vld [vmem:[%s465 + $0x60] sm:$0xff]
        %v479 = vld [vmem:[%s465 + $0x68] sm:$0xff]
        %v480 = vld [vmem:[%s465 + $0x70] sm:$0xff]
        %v481 = vld [vmem:[%s465 + $0x78] sm:$0xff]
        %482 = vmatpush.msra.mxu0 %v481
        %483 = vmatpush.msra.mxu0 %v480
        %484 = vmatpush.msra.mxu0 %v479
        %485 = vmatpush.msra.mxu0 %v478
        %486 = vmatpush.msra.mxu0 %v477
        %487 = vmatpush.msra.mxu0 %v476
        %488 = vmatpush.msra.mxu0 %v475
        %489 = vmatpush.msra.mxu0 %v474
        %490 = vmatpush.msra.mxu0 %v473
        %491 = vmatpush.msra.mxu0 %v472
        %492 = vmatpush.msra.mxu0 %v471
        %493 = vmatpush.msra.mxu0 %v470
        %494 = vmatpush.msra.mxu0 %v469
        %495 = vmatpush.msra.mxu0 %v468
        %496 = vmatpush.msra.mxu0 %v467
        %497 = vmatpush.msra.mxu0 %v466
        %498 = vmatmul.f32.gmra.mxu0 %v463
        %v499 = vpop.f32.mrf.mxu0
        %v500 = vadd.f32 0.0, %v499
        %501 = vmatmul.f32.gmra.mxu0 %v464
        %v502 = vpop.f32.mrf.mxu0
        %v503 = vadd.f32 0.0, %v502
        %504 = vdwg.mxu0
        %505 = vmatpush.msra.mxu0 %v462
        %506 = vmatpush.msra.mxu0 %v461
        %507 = vmatpush.msra.mxu0 %v460
        %508 = vmatpush.msra.mxu0 %v459
        %509 = vmatpush.msra.mxu0 %v458
        %510 = vmatpush.msra.mxu0 %v457
        %511 = vmatpush.msra.mxu0 %v456
        %512 = vmatpush.msra.mxu0 %v455
        %513 = vmatpush.msra.mxu0 %v454
        %514 = vmatpush.msra.mxu0 %v453
        %515 = vmatpush.msra.mxu0 %v452
        %516 = vmatpush.msra.mxu0 %v451
        %517 = vmatpush.msra.mxu0 %v450
        %518 = vmatpush.msra.mxu0 %v449
        %519 = vmatpush.msra.mxu0 %v448
        %520 = vmatpush.msra.mxu0 %v447
        %521 = vmatmul.f32.gmra.mxu0 %v445
        %v522 = vpop.f32.mrf.mxu0
        %v523 = vadd.f32 %v500, %v522
        %524 = vmatmul.f32.gmra.mxu0 %v446
        %v525 = vpop.f32.mrf.mxu0
        %v526 = vadd.f32 %v503, %v525
        %527 = vdwg.mxu0
        %v528 = vld [vmem:[#allocation2 + $0x2] sm:$0xff]
        %v529 = vld [vmem:[#allocation2 + $0xa] sm:$0xff]
        %s530 = scalar_lea.vmem %s3, 256
        %v531 = vld [vmem:[%s530] sm:$0xff]
        %v532 = vld [vmem:[%s530 + $0x8] sm:$0xff]
        %v533 = vld [vmem:[%s530 + $0x10] sm:$0xff]
        %v534 = vld [vmem:[%s530 + $0x18] sm:$0xff]
        %v535 = vld [vmem:[%s530 + $0x20] sm:$0xff]
        %v536 = vld [vmem:[%s530 + $0x28] sm:$0xff]
        %v537 = vld [vmem:[%s530 + $0x30] sm:$0xff]
        %v538 = vld [vmem:[%s530 + $0x38] sm:$0xff]
        %v539 = vld [vmem:[%s530 + $0x40] sm:$0xff]
        %v540 = vld [vmem:[%s530 + $0x48] sm:$0xff]
        %v541 = vld [vmem:[%s530 + $0x50] sm:$0xff]
        %v542 = vld [vmem:[%s530 + $0x58] sm:$0xff]
        %v543 = vld [vmem:[%s530 + $0x60] sm:$0xff]
        %v544 = vld [vmem:[%s530 + $0x68] sm:$0xff]
        %v545 = vld [vmem:[%s530 + $0x70] sm:$0xff]
        %v546 = vld [vmem:[%s530 + $0x78] sm:$0xff]
        %547 = vmatpush.msra.mxu0 %v546
        %548 = vmatpush.msra.mxu0 %v545
        %549 = vmatpush.msra.mxu0 %v544
        %550 = vmatpush.msra.mxu0 %v543
        %551 = vmatpush.msra.mxu0 %v542
        %552 = vmatpush.msra.mxu0 %v541
        %553 = vmatpush.msra.mxu0 %v540
        %554 = vmatpush.msra.mxu0 %v539
        %555 = vmatpush.msra.mxu0 %v538
        %556 = vmatpush.msra.mxu0 %v537
        %557 = vmatpush.msra.mxu0 %v536
        %558 = vmatpush.msra.mxu0 %v535
        %559 = vmatpush.msra.mxu0 %v534
        %560 = vmatpush.msra.mxu0 %v533
        %561 = vmatpush.msra.mxu0 %v532
        %562 = vmatpush.msra.mxu0 %v531
        %563 = vmatmul.f32.gmra.mxu0 %v528
        %v564 = vpop.f32.mrf.mxu0
        %v565 = vadd.f32 0.0, %v564
        %566 = vmatmul.f32.gmra.mxu0 %v529
        %v567 = vpop.f32.mrf.mxu0
        %v568 = vadd.f32 0.0, %v567
        %569 = vdwg.mxu0
        %v570 = vadd.f32 %v523, %v565
        %v571 = vadd.f32 %v526, %v568
        %v572 = vld [vmem:[%s4] sm:$0x1]
        %v574 = vperm.slane %v572, 0
        %v576 = vadd.f32 %v570, %v574
        %v577 = vadd.f32 %v571, %v574
        %v578 = vmax.f32 %v576, 0.0
        %v579 = vmax.f32 %v577, 0.0
        %580 = vst.msk [vmem:[#allocation3] sm:$0xff] %vm331, %v578
        %581 = vst.msk [vmem:[#allocation3 + $0x8] sm:$0xff] %vm331, %v579
        %v582 = vld [vmem:[#allocation3] sm:$0x1]
        %v583 = vld [vmem:[#allocation7] sm:$0xff]
        %v584 = vld [vmem:[#allocation7 + $0x8] sm:$0xff]
        %v585 = vld [vmem:[#allocation7 + $0x10] sm:$0xff]
        %v586 = vld [vmem:[#allocation7 + $0x18] sm:$0xff]
        %v587 = vld [vmem:[#allocation7 + $0x20] sm:$0xff]
        %v588 = vld [vmem:[#allocation7 + $0x28] sm:$0xff]
        %v589 = vld [vmem:[#allocation7 + $0x30] sm:$0xff]
        %v590 = vld [vmem:[#allocation7 + $0x38] sm:$0xff]
        %v591 = vld [vmem:[#allocation3 + $0x2] sm:$0x1]
        %v592 = vld [vmem:[#allocation7 + $0x40] sm:$0xff]
        %v593 = vld [vmem:[#allocation7 + $0x48] sm:$0xff]
        %v594 = vld [vmem:[#allocation7 + $0x50] sm:$0xff]
        %v595 = vld [vmem:[#allocation7 + $0x58] sm:$0xff]
        %v596 = vld [vmem:[#allocation7 + $0x60] sm:$0xff]
        %v597 = vld [vmem:[#allocation7 + $0x68] sm:$0xff]
        %v598 = vld [vmem:[#allocation7 + $0x70] sm:$0xff]
        %v599 = vld [vmem:[#allocation7 + $0x78] sm:$0xff]
        %v601 = vsel %vm331, %v591, 0
        %603 = vmatpush.msra.mxu0 0.0
        %604 = vmatpush.msra.mxu0 0.0
        %605 = vmatpush.msra.mxu0 0.0
        %606 = vmatpush.msra.mxu0 0.0
        %607 = vmatpush.msra.mxu0 0.0
        %608 = vmatpush.msra.mxu0 0.0
        %609 = vmatpush.msra.mxu0 0.0
        %610 = vmatpush.msra.mxu0 0.0
        %611 = vmatpush.msra.mxu0 %v599
        %612 = vmatpush.msra.mxu0 %v598
        %613 = vmatpush.msra.mxu0 %v597
        %614 = vmatpush.msra.mxu0 %v596
        %615 = vmatpush.msra.mxu0 %v595
        %616 = vmatpush.msra.mxu0 %v594
        %617 = vmatpush.msra.mxu0 %v593
        %618 = vmatpush.msra.mxu0 %v592
        %619 = vmatmul.f32.gmra.mxu0 %v601
        %v620 = vpop.f32.mrf.mxu0
        %v621 = vadd.f32 0.0, %v620
        %622 = vdwg.mxu0
        %v624 = vsel %vm331, %v582, 0
        %626 = vmatpush.msra.mxu0 0.0
        %627 = vmatpush.msra.mxu0 0.0
        %628 = vmatpush.msra.mxu0 0.0
        %629 = vmatpush.msra.mxu0 0.0
        %630 = vmatpush.msra.mxu0 0.0
        %631 = vmatpush.msra.mxu0 0.0
        %632 = vmatpush.msra.mxu0 0.0
        %633 = vmatpush.msra.mxu0 0.0
        %634 = vmatpush.msra.mxu0 %v590
        %635 = vmatpush.msra.mxu0 %v589
        %636 = vmatpush.msra.mxu0 %v588
        %637 = vmatpush.msra.mxu0 %v587
        %638 = vmatpush.msra.mxu0 %v586
        %639 = vmatpush.msra.mxu0 %v585
        %640 = vmatpush.msra.mxu0 %v584
        %641 = vmatpush.msra.mxu0 %v583
        %642 = vmatmul.f32.gmra.mxu0 %v624
        %v643 = vpop.f32.mrf.mxu0
        %v644 = vadd.f32 %v621, %v643
        %645 = vdwg.mxu0
        %v646 = vld [vmem:[#allocation3 + $0x4] sm:$0x1]
        %v647 = vld [vmem:[#allocation7 + $0x80] sm:$0xff]
        %v648 = vld [vmem:[#allocation7 + $0x88] sm:$0xff]
        %v649 = vld [vmem:[#allocation7 + $0x90] sm:$0xff]
        %v650 = vld [vmem:[#allocation7 + $0x98] sm:$0xff]
        %v651 = vld [vmem:[#allocation7 + $0xa0] sm:$0xff]
        %v652 = vld [vmem:[#allocation7 + $0xa8] sm:$0xff]
        %v653 = vld [vmem:[#allocation7 + $0xb0] sm:$0xff]
        %v654 = vld [vmem:[#allocation7 + $0xb8] sm:$0xff]
        %v656 = vsel %vm331, %v646, 0
        %658 = vmatpush.msra.mxu0 0.0
        %659 = vmatpush.msra.mxu0 0.0
        %660 = vmatpush.msra.mxu0 0.0
        %661 = vmatpush.msra.mxu0 0.0
        %662 = vmatpush.msra.mxu0 0.0
        %663 = vmatpush.msra.mxu0 0.0
        %664 = vmatpush.msra.mxu0 0.0
        %665 = vmatpush.msra.mxu0 0.0
        %666 = vmatpush.msra.mxu0 %v654
        %667 = vmatpush.msra.mxu0 %v653
        %668 = vmatpush.msra.mxu0 %v652
        %669 = vmatpush.msra.mxu0 %v651
        %670 = vmatpush.msra.mxu0 %v650
        %671 = vmatpush.msra.mxu0 %v649
        %672 = vmatpush.msra.mxu0 %v648
        %673 = vmatpush.msra.mxu0 %v647
        %674 = vmatmul.f32.gmra.mxu0 %v656
        %v675 = vpop.f32.mrf.mxu0
        %v676 = vadd.f32 0.0, %v675
        %677 = vdwg.mxu0
        %v678 = vadd.f32 %v644, %v676
        %v679 = vld [vmem:[#allocation3 + $0x6] sm:$0x1]
        %v680 = vld [vmem:[#allocation7 + $0xc0] sm:$0xff]
        %v681 = vld [vmem:[#allocation7 + $0xc8] sm:$0xff]
        %v682 = vld [vmem:[#allocation7 + $0xd0] sm:$0xff]
        %v683 = vld [vmem:[#allocation7 + $0xd8] sm:$0xff]
        %v684 = vld [vmem:[#allocation7 + $0xe0] sm:$0xff]
        %v685 = vld [vmem:[#allocation7 + $0xe8] sm:$0xff]
        %v686 = vld [vmem:[#allocation7 + $0xf0] sm:$0xff]
        %v687 = vld [vmem:[#allocation7 + $0xf8] sm:$0xff]
        %v689 = vsel %vm331, %v679, 0
        %691 = vmatpush.msra.mxu0 0.0
        %692 = vmatpush.msra.mxu0 0.0
        %693 = vmatpush.msra.mxu0 0.0
        %694 = vmatpush.msra.mxu0 0.0
        %695 = vmatpush.msra.mxu0 0.0
        %696 = vmatpush.msra.mxu0 0.0
        %697 = vmatpush.msra.mxu0 0.0
        %698 = vmatpush.msra.mxu0 0.0
        %699 = vmatpush.msra.mxu0 %v687
        %700 = vmatpush.msra.mxu0 %v686
        %701 = vmatpush.msra.mxu0 %v685
        %702 = vmatpush.msra.mxu0 %v684
        %703 = vmatpush.msra.mxu0 %v683
        %704 = vmatpush.msra.mxu0 %v682
        %705 = vmatpush.msra.mxu0 %v681
        %706 = vmatpush.msra.mxu0 %v680
        %707 = vmatmul.f32.gmra.mxu0 %v689
        %v708 = vpop.f32.mrf.mxu0
        %v709 = vadd.f32 0.0, %v708
        %710 = vdwg.mxu0
        %v711 = vadd.f32 %v678, %v709
        %v712 = vld [vmem:[#allocation3 + $0x8] sm:$0x1]
        %v713 = vld [vmem:[#allocation7 + $0x100] sm:$0xff]
        %v714 = vld [vmem:[#allocation7 + $0x108] sm:$0xff]
        %v715 = vld [vmem:[#allocation7 + $0x110] sm:$0xff]
        %v716 = vld [vmem:[#allocation7 + $0x118] sm:$0xff]
        %v717 = vld [vmem:[#allocation7 + $0x120] sm:$0xff]
        %v718 = vld [vmem:[#allocation7 + $0x128] sm:$0xff]
        %v719 = vld [vmem:[#allocation7 + $0x130] sm:$0xff]
        %v720 = vld [vmem:[#allocation7 + $0x138] sm:$0xff]
        %v722 = vsel %vm331, %v712, 0
        %724 = vmatpush.msra.mxu0 0.0
        %725 = vmatpush.msra.mxu0 0.0
        %726 = vmatpush.msra.mxu0 0.0
        %727 = vmatpush.msra.mxu0 0.0
        %728 = vmatpush.msra.mxu0 0.0
        %729 = vmatpush.msra.mxu0 0.0
        %730 = vmatpush.msra.mxu0 0.0
        %731 = vmatpush.msra.mxu0 0.0
        %732 = vmatpush.msra.mxu0 %v720
        %733 = vmatpush.msra.mxu0 %v719
        %734 = vmatpush.msra.mxu0 %v718
        %735 = vmatpush.msra.mxu0 %v717
        %736 = vmatpush.msra.mxu0 %v716
        %737 = vmatpush.msra.mxu0 %v715
        %738 = vmatpush.msra.mxu0 %v714
        %739 = vmatpush.msra.mxu0 %v713
        %740 = vmatmul.f32.gmra.mxu0 %v722
        %v741 = vpop.f32.mrf.mxu0
        %v742 = vadd.f32 0.0, %v741
        %743 = vdwg.mxu0
        %v744 = vadd.f32 %v711, %v742
        %v745 = vld [vmem:[#allocation3 + $0xa] sm:$0x1]
        %v746 = vld [vmem:[#allocation7 + $0x140] sm:$0xff]
        %v747 = vld [vmem:[#allocation7 + $0x148] sm:$0xff]
        %v748 = vld [vmem:[#allocation7 + $0x150] sm:$0xff]
        %v749 = vld [vmem:[#allocation7 + $0x158] sm:$0xff]
        %v750 = vld [vmem:[#allocation7 + $0x160] sm:$0xff]
        %v751 = vld [vmem:[#allocation7 + $0x168] sm:$0xff]
        %v752 = vld [vmem:[#allocation7 + $0x170] sm:$0xff]
        %v753 = vld [vmem:[#allocation7 + $0x178] sm:$0xff]
        %v755 = vsel %vm331, %v745, 0
        %757 = vmatpush.msra.mxu0 0.0
        %758 = vmatpush.msra.mxu0 0.0
        %759 = vmatpush.msra.mxu0 0.0
        %760 = vmatpush.msra.mxu0 0.0
        %761 = vmatpush.msra.mxu0 0.0
        %762 = vmatpush.msra.mxu0 0.0
        %763 = vmatpush.msra.mxu0 0.0
        %764 = vmatpush.msra.mxu0 0.0
        %765 = vmatpush.msra.mxu0 %v753
        %766 = vmatpush.msra.mxu0 %v752
        %767 = vmatpush.msra.mxu0 %v751
        %768 = vmatpush.msra.mxu0 %v750
        %769 = vmatpush.msra.mxu0 %v749
        %770 = vmatpush.msra.mxu0 %v748
        %771 = vmatpush.msra.mxu0 %v747
        %772 = vmatpush.msra.mxu0 %v746
        %773 = vmatmul.f32.gmra.mxu0 %v755
        %v774 = vpop.f32.mrf.mxu0
        %v775 = vadd.f32 0.0, %v774
        %776 = vdwg.mxu0
        %v777 = vadd.f32 %v744, %v775
        %v778 = vld [vmem:[#allocation3 + $0xc] sm:$0x1]
        %v779 = vld [vmem:[#allocation7 + $0x180] sm:$0xff]
        %v780 = vld [vmem:[#allocation7 + $0x188] sm:$0xff]
        %v781 = vld [vmem:[#allocation7 + $0x190] sm:$0xff]
        %v782 = vld [vmem:[#allocation7 + $0x198] sm:$0xff]
        %v783 = vld [vmem:[#allocation7 + $0x1a0] sm:$0xff]
        %v784 = vld [vmem:[#allocation7 + $0x1a8] sm:$0xff]
        %v785 = vld [vmem:[#allocation7 + $0x1b0] sm:$0xff]
        %v786 = vld [vmem:[#allocation7 + $0x1b8] sm:$0xff]
        %v788 = vsel %vm331, %v778, 0
        %790 = vmatpush.msra.mxu0 0.0
        %791 = vmatpush.msra.mxu0 0.0
        %792 = vmatpush.msra.mxu0 0.0
        %793 = vmatpush.msra.mxu0 0.0
        %794 = vmatpush.msra.mxu0 0.0
        %795 = vmatpush.msra.mxu0 0.0
        %796 = vmatpush.msra.mxu0 0.0
        %797 = vmatpush.msra.mxu0 0.0
        %798 = vmatpush.msra.mxu0 %v786
        %799 = vmatpush.msra.mxu0 %v785
        %800 = vmatpush.msra.mxu0 %v784
        %801 = vmatpush.msra.mxu0 %v783
        %802 = vmatpush.msra.mxu0 %v782
        %803 = vmatpush.msra.mxu0 %v781
        %804 = vmatpush.msra.mxu0 %v780
        %805 = vmatpush.msra.mxu0 %v779
        %806 = vmatmul.f32.gmra.mxu0 %v788
        %v807 = vpop.f32.mrf.mxu0
        %v808 = vadd.f32 0.0, %v807
        %809 = vdwg.mxu0
        %v810 = vadd.f32 %v777, %v808
        %v811 = vld [vmem:[#allocation3 + $0xe] sm:$0x1]
        %v812 = vld [vmem:[#allocation7 + $0x1c0] sm:$0xff]
        %v813 = vld [vmem:[#allocation7 + $0x1c8] sm:$0xff]
        %v814 = vld [vmem:[#allocation7 + $0x1d0] sm:$0xff]
        %v815 = vld [vmem:[#allocation7 + $0x1d8] sm:$0xff]
        %v816 = vld [vmem:[#allocation7 + $0x1e0] sm:$0xff]
        %v817 = vld [vmem:[#allocation7 + $0x1e8] sm:$0xff]
        %v818 = vld [vmem:[#allocation7 + $0x1f0] sm:$0xff]
        %v819 = vld [vmem:[#allocation7 + $0x1f8] sm:$0xff]
        %v821 = vsel %vm331, %v811, 0
        %823 = vmatpush.msra.mxu0 0.0
        %824 = vmatpush.msra.mxu0 0.0
        %825 = vmatpush.msra.mxu0 0.0
        %826 = vmatpush.msra.mxu0 0.0
        %827 = vmatpush.msra.mxu0 0.0
        %828 = vmatpush.msra.mxu0 0.0
        %829 = vmatpush.msra.mxu0 0.0
        %830 = vmatpush.msra.mxu0 0.0
        %831 = vmatpush.msra.mxu0 %v819
        %832 = vmatpush.msra.mxu0 %v818
        %833 = vmatpush.msra.mxu0 %v817
        %834 = vmatpush.msra.mxu0 %v816
        %835 = vmatpush.msra.mxu0 %v815
        %836 = vmatpush.msra.mxu0 %v814
        %837 = vmatpush.msra.mxu0 %v813
        %838 = vmatpush.msra.mxu0 %v812
        %839 = vmatmul.f32.gmra.mxu0 %v821
        %v840 = vpop.f32.mrf.mxu0
        %v841 = vadd.f32 0.0, %v840
        %842 = vdwg.mxu0
        %v843 = vadd.f32 %v810, %v841
        %v844 = vld [vmem:[%s6] sm:$0x1]
        %v845 = vadd.f32 %v843, %v844
        %vm846 = vcmask 253952
        %847 = vst.msk [vmem:[%s304] sm:$0x1] %vm846, %v845
        %s848 = sand.u32 %s183, 1
        %s849 = scalar_lea.sflag [#allocation6], %s848
        %s850 = sand.u32 %s183, 1
        %s851 = scalar_lea.vmem [#allocation9], %s850
        // Predicated region
        $region57: #{cnn_forward.1} parent=47 // pred_check
          %p852 = pneg %p193
        $region58: #{cnn_forward.1} parent=47 // pred_check_branch
          %854 = sbr.rel (%p852) target = $region60
        $region59: #{cnn_forward.1} parent=47 // pred_region
          %856 = vsyncadd %s849, 0
          %s857 = scalar_lea.hbm %s7, %s23
          %s859 = sshll.u32 %s851, 4
          %s860 = int_to_ptr.vmem [resolvable:$true] %s859
          %s861 = sshll.u32 %s857, 4
          %s862 = int_to_ptr.hbm [resolvable:$true] %s861
          %864 = dma.vmem_to_hbm [thread:$0]  %s860, 16, %s862, %s849
        $region60: #{cnn_forward.1} parent=47 // pred_fallthru
          _
      $region48: #{cnn_forward.1} parent=5 // pred_fallthru
        _
      %p865 = scmp.le.s32.totalorder 2, %s18
      // Predicated region
      $region61: #{cnn_forward.1} parent=5 // pred_check
        %p866 = pneg %p865
      $region62: #{cnn_forward.1} parent=5 // pred_check_branch
        %868 = sbr.rel (%p866) target = $region64
      $region63: #{cnn_forward.1} parent=5 // pred_region
        %s869 = ssub.s32 %s18, 2
        // Predicated region
        $region65: #{cnn_forward.1} parent=63 // pred_check
          %p870 = pneg %p199
        $region66: #{cnn_forward.1} parent=63 // pred_check_branch
          %872 = sbr.rel (%p870) target = $region68
        $region67: #{cnn_forward.1} parent=63 // pred_region
          %s873 = sand.u32 %s184, 1
          %s874 = scalar_lea.sflag [#allocation6], %s873
          %s875 = sand.u32 %s184, 1
          %s876 = scalar_lea.vmem [#allocation9], %s875
          %878 = dma.done %s874, 16
        $region68: #{cnn_forward.1} parent=63 // pred_fallthru
          _
      $region64: #{cnn_forward.1} parent=5 // pred_fallthru
        _
    $region6: #{cnn_forward.1} parent=1 // loop_footer
      %s22 = sadd.s32 1, %s18
    $region7: #{cnn_forward.1} parent=1 // loop_footer_branch
      %17 = sbr.rel target = $region3
    $region8: #{cnn_forward.1} parent=1 // loop_exit
      _
    %879 = vsyncpa [#allocation5], 1
    %s880 = scalar_lea.sflag [#allocation5], 1
    %881 = vsyncpa %s880, 1
    %882 = vsyncpa [#allocation8], 1
    %883 = vsyncpa [#allocation6], 1
    %s884 = scalar_lea.sflag [#allocation6], 1
    %885 = vsyncpa %s884, 1

</llo_original>
